<compile_context>
chip_gen: v7x
topology: tpu7x:2x2x1
jax: 0.10.0
libtpu: 0.0.40
codegen_flags: <defaults>
</compile_context>

<pallas_src>
import functools
import math

import jax
import jax.numpy as jnp
from jax.experimental import pallas as pl
from jax.experimental.pallas import tpu as pltpu


# ---------------------------------------------------------------------------
# Buffer init (mirrors the PyTorch __init__ double loop exactly).
# ---------------------------------------------------------------------------
def _build_pe(max_seq_len: int, embed_dim: int) -> jnp.ndarray:
    """pe[pos, i]   = sin(pos / 10000**(2*i/D))       for even i
       pe[pos, i+1] = cos(pos / 10000**(2*(i+1)/D))
    Returns [max_seq_len, embed_dim] float32."""
    if embed_dim % 2 != 0:
        raise ValueError("embed_dim must be even (the PyTorch init loop "
                         "writes pe[pos, i+1] for every even i).")
    pos = jnp.arange(max_seq_len, dtype=jnp.float32)[:, None]            # [S, 1]
    i_even = jnp.arange(0, embed_dim, 2, dtype=jnp.float32)[None, :]     # [1, D/2]
    sin_part = jnp.sin(pos / jnp.power(10000.0, 2.0 * i_even / embed_dim))
    cos_part = jnp.cos(pos / jnp.power(10000.0, 2.0 * (i_even + 1.0) / embed_dim))
    pe = jnp.stack([sin_part, cos_part], axis=-1).reshape(max_seq_len, embed_dim)
    return pe.astype(jnp.float32)


# ---------------------------------------------------------------------------
# Tile selection: lane-dense ~4 MiB blocks over a (B, C=S*D) view.
# ---------------------------------------------------------------------------
_TARGET_BYTES = 4 * 1024 * 1024      # ~4 MiB per block (amortize grid-step cost)
_MIN_SPLIT_BYTES = 2 * 1024 * 1024   # beyond this, force >=2 grid steps (v7x 2 TCs)


def _sublane_granularity(dtype) -> int:
    """Minimum legal sublane multiple: 8 for f32, 16 for bf16, 32 for int8/fp8."""
    return max(8, 32 // jnp.dtype(dtype).itemsize)


def _pick_tiles(B: int, C: int, dtype) -> tuple[int, int, int]:
    """Pick (tb, tc, c_pad) for a (B, C) elementwise stream.

    tc is a multiple of 128 or equals the (possibly padded) full row c_pad;
    tb is a multiple of the dtype's sublane granularity or equals B.
    c_pad >= C is a multiple of 128 whenever the row must be split.
    """
    itemsize = jnp.dtype(dtype).itemsize
    sub = _sublane_granularity(dtype)
    target_elems = max(1, _TARGET_BYTES // itemsize)

    # --- lane (last) dim ---------------------------------------------------
    min_tb = B if B <= sub else sub
    col_budget = max(128, target_elems // min_tb)
    c_pad = C
    if C <= col_budget:
        tc = C                                   # full row block: always legal
    else:
        if C % 128 != 0:
            c_pad = ((C + 127) // 128) * 128     # pad ragged rows; wrapper slices
        tc = min(c_pad, max(128, (col_budget // 128) * 128))

    # --- sublane (second-to-last) dim ---------------------------------------
    rows_budget = max(1, target_elems // tc)
    if B <= sub or rows_budget >= B:
        tb = B                                   # full batch: always legal
    else:
        tb = max(sub, (rows_budget // sub) * sub)

    # --- guarantee >=2 grid steps for multi-MiB problems (v7x megacore) -----
    total_bytes = B * c_pad * itemsize
    steps = (-(-B // tb)) * (-(-c_pad // tc))
    if total_bytes >= _MIN_SPLIT_BYTES and steps < 2:
        if B >= 2 * sub:
            # Prefer splitting the batch axis: pe depends only on the column
            # tile, so it stays resident across batch steps.
            tb = max(sub, ((B // 2) // sub) * sub)
        elif c_pad % 128 == 0 and c_pad >= 256:
            tc = max(128, ((c_pad // 2) // 128) * 128)
    return tb, tc, c_pad


# ---------------------------------------------------------------------------
# Kernel: o = x * sqrt(D) + pe   (pe broadcast over the batch/sublane axis).
# ---------------------------------------------------------------------------
def _pos_embed_kernel(x_ref, pe_ref, o_ref, *, scale: float):
    # x_ref, o_ref: (tb, tc);  pe_ref: (1, tc) -> sublane broadcast.
    o_ref[...] = x_ref[...] * scale + pe_ref[...]


def _pos_embed_pallas(x2: jnp.ndarray, pe_flat: jnp.ndarray,
                      tb: int, tc: int, scale: float) -> jnp.ndarray:
    B, C = x2.shape
    grid = (pl.cdiv(C, tc), pl.cdiv(B, tb))               # batch tiles innermost
    kernel = functools.partial(_pos_embed_kernel, scale=scale)
    return pl.pallas_call(
        kernel,
        out_shape=jax.ShapeDtypeStruct((B, C), x2.dtype),
        grid_spec=pltpu.PrefetchScalarGridSpec(
            num_scalar_prefetch=0,
            grid=grid,
            in_specs=[
                # x: varies with both grid axes.
                pl.BlockSpec((tb, tc), lambda j, i: (i, j)),
                # pe: depends only on the column tile -> stays resident in
                # VMEM across the inner (batch) axis, no re-DMA per step.
                pl.BlockSpec((1, tc), lambda j, i: (0, j)),
            ],
            out_specs=pl.BlockSpec((tb, tc), lambda j, i: (i, j)),
        ),
        compiler_params=pltpu.CompilerParams(
            dimension_semantics=("parallel", "parallel"),
            vmem_limit_bytes=32 * 1024 * 1024,
        ),
    )(x2, pe_flat)


# ---------------------------------------------------------------------------
# Module-equivalent wrapper (buffer built once; flat pe cached per call shape).
# ---------------------------------------------------------------------------
class PositionalEmbedding:
    def __init__(self, max_seq_len: int, embed_model_dim: int):
        self.embed_dim = embed_model_dim
        self.max_seq_len = max_seq_len
        self.scale = math.sqrt(embed_model_dim)
        self.pe = _build_pe(max_seq_len, embed_model_dim)   # [max_seq_len, D] f32
        self._pe_cache = {}                                  # (S, dtype, c_pad) -> [1, c_pad]

    def _flat_pe(self, seq_len: int, dtype, c_pad: int) -> jnp.ndarray:
        key = (seq_len, jnp.dtype(dtype).name, c_pad)
        if key not in self._pe_cache:
            C = seq_len * self.embed_dim
            pe = self.pe[:seq_len, :].astype(dtype).reshape(1, C)
            if c_pad > C:
                pe = jnp.pad(pe, ((0, 0), (0, c_pad - C)))
            self._pe_cache[key] = pe
        return self._pe_cache[key]

    def __call__(self, x: jnp.ndarray) -> jnp.ndarray:
        B, S, D = x.shape
        if D != self.embed_dim:
            raise ValueError(f"embed_dim mismatch: x has {D}, module has {self.embed_dim}")
        if S > self.max_seq_len:
            raise ValueError(f"seq_len {S} exceeds max_seq_len {self.max_seq_len}")

        C = S * D
        tb, tc, c_pad = _pick_tiles(B, C, x.dtype)
        pe_flat = self._flat_pe(S, x.dtype, c_pad)           # hoisted / cached
        x2 = x.reshape(B, C)
        if c_pad > C:
            x2 = jnp.pad(x2, ((0, 0), (0, c_pad - C)))
        out = _pos_embed_pallas(x2, pe_flat, tb, tc, self.scale)
        if c_pad > C:
            out = out[:, :C]
        return out.reshape(B, S, D)


# TODO(synk): for a full model, fuse this scale+add into the adjacent embedding
# lookup / encoder-prologue kernel to avoid a standalone pass over activations
# (the op has zero arithmetic intensity; removing the extra HBM pass is ~2x).


if __name__ == "__main__":
    # Small shapes consistent with the module's forward: [batch, seq, embed].
    B, S, D = 2, 8, 32
    MAX_SEQ_LEN = 16

    key = jax.random.PRNGKey(0)
    x = jax.random.normal(key, (B, S, D), dtype=jnp.float32)

    module = PositionalEmbedding(MAX_SEQ_LEN, D)

    out = module(x)
    out = jax.block_until_ready(out)

    # Pure-JAX reference.
    ref = x * math.sqrt(D) + module.pe[None, :S, :]
    assert out.shape == (B, S, D)
    assert jnp.allclose(out, ref, atol=1e-5, rtol=1e-5), "mismatch vs reference"

    # Second small case with a non-128-multiple flat row (S*D = 160).
    S2 = 5
    x2 = jax.random.normal(jax.random.PRNGKey(1), (B, S2, D), dtype=jnp.float32)
    out2 = jax.block_until_ready(module(x2))
    ref2 = x2 * math.sqrt(D) + module.pe[None, :S2, :]
    assert jnp.allclose(out2, ref2, atol=1e-5, rtol=1e-5), "mismatch vs reference (ragged)"

    print("KERNEL_OK")
</pallas_src>

<mosaic_0001>
module attributes {stable_mosaic.version = 11 : i64} {
  func.func @_pos_embed_kernel(%arg0: i32, %arg1: i32, %arg2: memref<2x256xf32, #tpu.memory_space<vmem>>, %arg3: memref<1x256xf32, #tpu.memory_space<vmem>>, %arg4: memref<2x256xf32, #tpu.memory_space<vmem>>) attributes {dimension_semantics = [#tpu.dimension_semantics<parallel>, #tpu.dimension_semantics<parallel>], iteration_bounds = array<i64: 1, 1>, scalar_prefetch = 0 : i64, scratch_operands = 0 : i64, tpu.core_type = #tpu.core_type<tc>, window_params = [{transform_indices = @transform_0, window_bounds = array<i64: 2, 256>}, {transform_indices = @transform_1, window_bounds = array<i64: 1, 256>}, {transform_indices = @transform_2, window_bounds = array<i64: 2, 256>}]} {
    %c0 = arith.constant 0 : index
    %c0_0 = arith.constant 0 : index
    %0 = vector.load %arg2[%c0, %c0_0] : memref<2x256xf32, #tpu.memory_space<vmem>>, vector<2x256xf32>
    %cst = arith.constant 5.65685415 : f32
    %1 = vector.broadcast %cst : f32 to vector<2x256xf32>
    %2 = arith.mulf %0, %1 : vector<2x256xf32>
    %c0_1 = arith.constant 0 : index
    %c0_2 = arith.constant 0 : index
    %3 = vector.load %arg3[%c0_1, %c0_2] : memref<1x256xf32, #tpu.memory_space<vmem>>, vector<1x256xf32>
    %4 = vector.broadcast %3 : vector<1x256xf32> to vector<2x256xf32>
    %5 = arith.addf %2, %4 : vector<2x256xf32>
    %c0_3 = arith.constant 0 : index
    %c0_4 = arith.constant 0 : index
    %6 = vector.load %arg4[%c0_3, %c0_4] : memref<2x256xf32, #tpu.memory_space<vmem>>, vector<2x256xf32>
    tpu.vector_store %arg4[%c0_3, %c0_4], %5 {strides = array<i32>} : memref<2x256xf32, #tpu.memory_space<vmem>>, vector<2x256xf32>,
    return
  }
  func.func @transform_0(%arg0: i32, %arg1: i32) -> (i32, i32) {
    %c0_i32 = arith.constant 0 : i32
    return %arg1, %arg0 : i32, i32
  }
  func.func @transform_1(%arg0: i32, %arg1: i32) -> (i32, i32) {
    %c0_i32 = arith.constant 0 : i32
    %c0_i32_0 = arith.constant 0 : i32
    return %c0_i32, %arg0 : i32, i32
  }
  func.func @transform_2(%arg0: i32, %arg1: i32) -> (i32, i32) {
    %c0_i32 = arith.constant 0 : i32
    return %arg1, %arg0 : i32, i32
  }
}

</mosaic_0001>

<llo_original>
// kernel: tpu_custom_call.1
$region0: #{tpu_custom_call.1}
  #allocation0 [shape = 'u32[]', space=smem, size = 0x4, offset = 0x4, fixed_abs, tag = 'smem constant byte address 0x4 - core index']
  #allocation1 [shape = 'u32[144,128]{1,0:T(1,128)}', space=vmem, size = 0x12000, scoped, tag = 'internal scratch']
  %s0 = inlined_call_operand.hbm [shape: f32[2,256], index: 0, kind: input, shape index: {}]
  %s1 = inlined_call_operand.vmem [shape: f32[1,256], index: 1, kind: input, shape index: {}]
  %s2 = inlined_call_operand.hbm [shape: f32[2,256], index: 2, kind: output, shape index: {}]
  %s3 = sld [smem:[#allocation0]]
  $region22: #{tpu_custom_call.1} parent=0
    _
  %s5 = ssub.s32 1, %s3
  %s6 = scalar_select 0, %s5, %s3
  $region1: #{tpu_custom_call.1} parent=0
    #allocation2 [shape = 'u8[2048]{0}', space=vmem, size = 0x800, scoped, tag = 'input window, operand 0, single buffered']
    #allocation3 [shape = 's32[1]{0}', space=sflag, size = 0x4, scoped, tag = 'scoped memory for tpu_custom_call.1']
    #allocation4 [shape = 's32[1]{0}', space=sflag, size = 0x4, scoped, tag = 'scoped memory for tpu_custom_call.1']
    #allocation5 [shape = 'u8[2048]{0}', space=vmem, size = 0x800, scoped, tag = 'output window, operand 0, single buffered']
    %7 = vsyncpa [#allocation3], 0
    %8 = vsyncpa [#allocation4], 0
    // Predicated region
    $region2: #{tpu_custom_call.1} parent=1 // pred_check
      _
    $region3: #{tpu_custom_call.1} parent=1 // pred_check_branch
      %10 = sbr.rel (0) target = $region5
    $region4: #{tpu_custom_call.1} parent=1 // pred_region
      %s12 = ssub.s32 64, 64
      %13 = vsyncadd [#allocation3], %s12
      %s15 = sshll.u32 [#allocation2], 4
      %s16 = int_to_ptr.vmem [resolvable:$true] %s15
      %18 = dma.hbm_to_vmem [thread:$0]  %s0, 64, %s16, [#allocation3]
    $region5: #{tpu_custom_call.1} parent=1 // pred_fallthru
      _
    // Predicated region
    $region6: #{tpu_custom_call.1} parent=1 // pred_check
      _
    $region7: #{tpu_custom_call.1} parent=1 // pred_check_branch
      %20 = sbr.rel (0) target = $region9
    $region8: #{tpu_custom_call.1} parent=1 // pred_region
      _
    $region9: #{tpu_custom_call.1} parent=1 // pred_fallthru
      _
    // Predicated region
    $region10: #{tpu_custom_call.1} parent=1 // pred_check
      _
    $region11: #{tpu_custom_call.1} parent=1 // pred_check_branch
      %22 = sbr.rel (0) target = $region13
    $region12: #{tpu_custom_call.1} parent=1 // pred_region
      %23 = dma.done [#allocation3], 64
    $region13: #{tpu_custom_call.1} parent=1 // pred_fallthru
      _
    %v24 = vld [vmem:[#allocation2] sm:$0xf]
    %v25 = vmul.f32 %v24, 5.656854
    %v26 = vld [vmem:[%s1] sm:$0x3]
    %v28 = vlaneseq
    %v29 = vshrl.u32 %v28, 7
    %v30 = vsub.s32 0, %v29
    %v31 = vrot.slane %v26, %v30
    %v32 = vlaneseq
    %v33 = vshrl.u32 %v32, 7
    %v34 = vsub.s32 1, %v33
    %v35 = vrot.slane %v26, %v34
    %v36 = vcombine.low %v31, %v35
    %v38 = vunpack.c.l.s4 1983009808
    %v39 = vunpack.c.0.s8 %v38
    %v40 = vlaneseq
    %v41 = vshrl.u32 %v40, 7
    %v42 = vsub.s32 %v39, %v41
    %v43 = vrot.slane %v36, %v42
    %v45 = vadd.f32 %v25, %v43
    %46 = vst [vmem:[#allocation5] sm:$0xf] %v45
    // Predicated region
    $region14: #{tpu_custom_call.1} parent=1 // pred_check
      _
    $region15: #{tpu_custom_call.1} parent=1 // pred_check_branch
      %48 = sbr.rel (0) target = $region17
    $region16: #{tpu_custom_call.1} parent=1 // pred_region
      %s50 = ssub.s32 64, 64
      %51 = vsyncadd [#allocation4], %s50
      %s53 = sshll.u32 [#allocation5], 4
      %s54 = int_to_ptr.vmem [resolvable:$true] %s53
      %56 = dma.vmem_to_hbm [thread:$0]  %s54, 64, %s2, [#allocation4]
    $region17: #{tpu_custom_call.1} parent=1 // pred_fallthru
      _
    // Predicated region
    $region18: #{tpu_custom_call.1} parent=1 // pred_check
      _
    $region19: #{tpu_custom_call.1} parent=1 // pred_check_branch
      %58 = sbr.rel (0) target = $region21
    $region20: #{tpu_custom_call.1} parent=1 // pred_region
      %59 = dma.done [#allocation4], 64
    $region21: #{tpu_custom_call.1} parent=1 // pred_fallthru
      _
    %60 = vsyncpa [#allocation3], 1
    %61 = vsyncpa [#allocation4], 1

</llo_original>
